<compile_context>
chip_gen: v6e
topology: v6e:2x2x1
jax: 0.10.0
libtpu: 0.0.40
codegen_flags: <defaults>
</compile_context>

<pallas_src>
import math
import functools

import jax
import jax.numpy as jnp
import numpy as np
from jax.experimental import pallas as pl
from jax.experimental.pallas import tpu as pltpu


# ---------------------------------------------------------------------------
# Parameter setup (glue): fixed positional-encoding table, exactly the
# PyTorch __init__ double loop. (Like torch, this assumes even lenWord or 1.)
# ---------------------------------------------------------------------------
def build_pe(len_word: int, max_seq_len: int) -> jnp.ndarray:
    pe = np.zeros((max_seq_len, len_word), dtype=np.float32)
    for pos in range(max_seq_len):
        for i in range(0, len_word, 2):
            pe[pos, i] = math.sin(pos / 10000 ** (2 * i / len_word))
            if len_word != 1:
                pe[pos, i + 1] = math.cos(pos / 10000 ** (2 * (i + 1) / len_word))
    return jnp.asarray(pe[None, :, :])  # (1, max_seq_len, len_word)


# ---------------------------------------------------------------------------
# Kernels (operate on lane-dense (rows, cols) tiles)
# ---------------------------------------------------------------------------
def _pos_enc_kernel(x_ref, pe_ref, o_ref, *, scale):
    x = x_ref[...].astype(jnp.float32)        # (tr, tc)
    pe = pe_ref[...].astype(jnp.float32)      # (1,  tc) -> broadcast over rows
    o_ref[...] = (x * scale + pe).astype(o_ref.dtype)


def _pos_enc_dropout_kernel(x_ref, pe_ref, u_ref, o_ref, *, scale, dropout_p):
    x = x_ref[...].astype(jnp.float32)
    pe = pe_ref[...].astype(jnp.float32)
    y = x * scale + pe
    keep = u_ref[...] >= jnp.float32(dropout_p)          # single VPU compare
    inv_keep = jnp.float32(1.0 / (1.0 - dropout_p))
    y = jnp.where(keep, y * inv_keep, jnp.float32(0.0))  # inverted dropout
    o_ref[...] = y.astype(o_ref.dtype)


# ---------------------------------------------------------------------------
# Tiling helper
# ---------------------------------------------------------------------------
def _largest_divisor_tile(n: int, unit: int, max_tile: int):
    """Largest multiple of `unit` that divides n and is <= max_tile.
    Returns None if n is not a multiple of `unit`."""
    if n % unit != 0:
        return None
    t = min(n, (max_tile // unit) * unit)
    while t >= unit:
        if n % t == 0:
            return t
        t -= unit
    return unit


# ---------------------------------------------------------------------------
# Wrapper
# ---------------------------------------------------------------------------
def positional_encoder_fixed(x, pe_full, *, len_word, dropout_p=0.1,
                             training=False, rng_key=None,
                             max_tile_rows=512, max_tile_cols=2048):
    """x: (B, S, D) with D == len_word; pe_full: (1, max_seq_len, D)."""
    B, S, D = x.shape
    assert D == len_word == pe_full.shape[-1]
    assert S <= pe_full.shape[1]
    SD = S * D
    scale = float(math.sqrt(len_word))

    # Lane-dense layout (row-major reshapes are free).
    x2 = x.reshape(B, SD)
    pe2 = pe_full.reshape(1, pe_full.shape[1] * D)   # full table; slice via index_map

    tile_c = _largest_divisor_tile(SD, 128, max_tile_cols)
    if tile_c is None:
        # SD not a multiple of 128: use one full-width block and slice pe so its
        # full extent matches the block (small copy; only hit for odd sizes).
        tile_c = SD
        pe2 = pe2[:, :SD]
    tile_r = _largest_divisor_tile(B, 8, max_tile_rows) or B

    gr = B // tile_r
    gc = SD // tile_c

    apply_dropout = bool(training) and float(dropout_p) > 0.0

    # Grid = (cols, rows): rows innermost so the pe block index (0, j) is
    # constant across the inner axis -> pe stays resident in VMEM.
    inputs = [x2, pe2]
    in_specs = [
        pl.BlockSpec((tile_r, tile_c), lambda j, i: (i, j)),   # x
        pl.BlockSpec((1, tile_c), lambda j, i: (0, j)),        # pe (batch-broadcast)
    ]

    itemsize = jnp.dtype(x.dtype).itemsize
    bytes_accessed = 2 * B * SD * itemsize + SD * 4            # x in + out + pe
    vmem_needed = 2 * (2 * tile_r * tile_c * itemsize + tile_c * 4)

    if apply_dropout:
        if rng_key is None:
            rng_key = jax.random.PRNGKey(0)
        # TODO(synk): torch's dropout RNG stream cannot be bit-matched; uniforms
        # come from jax.random outside the kernel (distributionally equivalent).
        u = jax.random.uniform(rng_key, (B, SD), dtype=jnp.float32)
        inputs.append(u)
        in_specs.append(pl.BlockSpec((tile_r, tile_c), lambda j, i: (i, j)))
        kernel = functools.partial(_pos_enc_dropout_kernel, scale=scale,
                                   dropout_p=float(dropout_p))
        bytes_accessed += B * SD * 4
        vmem_needed += 2 * tile_r * tile_c * 4
    else:
        kernel = functools.partial(_pos_enc_kernel, scale=scale)

    # Explicit VMEM budget (double-buffered blocks + headroom), capped so the
    # same tiling is safe on v7x's 64 MiB VMEM.
    vmem_limit = int(min(max(vmem_needed + (2 << 20), 16 << 20), 48 << 20))

    out2 = pl.pallas_call(
        kernel,
        out_shape=jax.ShapeDtypeStruct((B, SD), x.dtype),
        grid_spec=pltpu.PrefetchScalarGridSpec(
            num_scalar_prefetch=0,
            grid=(gc, gr),
            in_specs=in_specs,
            out_specs=pl.BlockSpec((tile_r, tile_c), lambda j, i: (i, j)),
        ),
        compiler_params=pltpu.CompilerParams(
            dimension_semantics=("parallel", "parallel"),
            vmem_limit_bytes=vmem_limit,
        ),
        cost_estimate=pl.CostEstimate(flops=2 * B * SD, transcendentals=0,
                                      bytes_accessed=int(bytes_accessed)),
    )(*inputs)

    return out2.reshape(B, S, D)


# ---------------------------------------------------------------------------
# Pure-JAX reference (eval mode: dropout is identity)
# ---------------------------------------------------------------------------
def ref_positional_encoder(x, pe_full, len_word):
    S = x.shape[1]
    return x * math.sqrt(len_word) + pe_full[:, :S, :]


if __name__ == "__main__":
    # Small shapes consistent with the module's forward: (batch, seq, lenWord)
    LEN_WORD = 32
    MAX_SEQ_LEN = 16
    B, S = 2, 8

    key = jax.random.PRNGKey(0)
    x = jax.random.normal(key, (B, S, LEN_WORD), dtype=jnp.float32)

    pe_full = build_pe(LEN_WORD, MAX_SEQ_LEN)

    # Eval mode (dropout = identity) — matches the PyTorch module in .eval().
    out = positional_encoder_fixed(x, pe_full, len_word=LEN_WORD,
                                   dropout_p=0.1, training=False)
    out = jax.block_until_ready(out)

    ref = ref_positional_encoder(x, pe_full, LEN_WORD)
    np.testing.assert_allclose(np.asarray(out), np.asarray(ref),
                               rtol=1e-6, atol=1e-6)

    # Training mode (fused inverted dropout): exercise the path once and check
    # that surviving elements equal the eval output scaled by 1/(1-p).
    p = 0.1
    out_train = positional_encoder_fixed(x, pe_full, len_word=LEN_WORD,
                                         dropout_p=p, training=True,
                                         rng_key=jax.random.PRNGKey(1234))
    out_train = jax.block_until_ready(out_train)
    ot = np.asarray(out_train)
    rf = np.asarray(ref)
    kept = ot != 0.0
    np.testing.assert_allclose(ot[kept], rf[kept] / (1.0 - p), rtol=1e-5, atol=1e-5)

    print("KERNEL_OK")
</pallas_src>

<mosaic_0001>
module attributes {stable_mosaic.version = 11 : i64} {
  func.func @_pos_enc_kernel(%arg0: i32, %arg1: i32, %arg2: memref<2x256xf32, #tpu.memory_space<vmem>>, %arg3: memref<1x256xf32, #tpu.memory_space<vmem>>, %arg4: memref<2x256xf32, #tpu.memory_space<vmem>>) attributes {dimension_semantics = [#tpu.dimension_semantics<parallel>, #tpu.dimension_semantics<parallel>], iteration_bounds = array<i64: 1, 1>, scalar_prefetch = 0 : i64, scratch_operands = 0 : i64, tpu.core_type = #tpu.core_type<tc>, window_params = [{transform_indices = @transform_0, window_bounds = array<i64: 2, 256>}, {transform_indices = @transform_1, window_bounds = array<i64: 1, 256>}, {transform_indices = @transform_2, window_bounds = array<i64: 2, 256>}]} {
    %c0 = arith.constant 0 : index
    %c0_0 = arith.constant 0 : index
    %0 = vector.load %arg2[%c0, %c0_0] : memref<2x256xf32, #tpu.memory_space<vmem>>, vector<2x256xf32>
    %c0_1 = arith.constant 0 : index
    %c0_2 = arith.constant 0 : index
    %1 = vector.load %arg3[%c0_1, %c0_2] : memref<1x256xf32, #tpu.memory_space<vmem>>, vector<1x256xf32>
    %cst = arith.constant 5.65685415 : f32
    %2 = vector.broadcast %cst : f32 to vector<2x256xf32>
    %3 = arith.mulf %0, %2 : vector<2x256xf32>
    %4 = vector.broadcast %1 : vector<1x256xf32> to vector<2x256xf32>
    %5 = arith.addf %3, %4 : vector<2x256xf32>
    %c0_3 = arith.constant 0 : index
    %c0_4 = arith.constant 0 : index
    %6 = vector.load %arg4[%c0_3, %c0_4] : memref<2x256xf32, #tpu.memory_space<vmem>>, vector<2x256xf32>
    tpu.vector_store %arg4[%c0_3, %c0_4], %5 {strides = array<i32>} : memref<2x256xf32, #tpu.memory_space<vmem>>, vector<2x256xf32>,
    return
  }
  func.func @transform_0(%arg0: i32, %arg1: i32) -> (i32, i32) {
    %c0_i32 = arith.constant 0 : i32
    return %arg1, %arg0 : i32, i32
  }
  func.func @transform_1(%arg0: i32, %arg1: i32) -> (i32, i32) {
    %c0_i32 = arith.constant 0 : i32
    %c0_i32_0 = arith.constant 0 : i32
    return %c0_i32, %arg0 : i32, i32
  }
  func.func @transform_2(%arg0: i32, %arg1: i32) -> (i32, i32) {
    %c0_i32 = arith.constant 0 : i32
    return %arg1, %arg0 : i32, i32
  }
}

</mosaic_0001>

<llo_original>
// kernel: tpu_custom_call.1
$region0: #{tpu_custom_call.1}
  #allocation0 [shape = 'u32[]', space=smem, size = 0x4, offset = 0x4, fixed_abs, tag = 'smem constant byte address 0x4 - core index']
  #allocation1 [shape = 'u32[144,128]{1,0:T(1,128)}', space=vmem, size = 0x12000, scoped, tag = 'internal scratch']
  %s0 = inlined_call_operand.hbm [shape: f32[2,256], index: 0, kind: input, shape index: {}]
  %s1 = inlined_call_operand.hbm [shape: f32[1,512], index: 1, kind: input, shape index: {}]
  %s2 = inlined_call_operand.hbm [shape: f32[2,256], index: 2, kind: output, shape index: {}]
  %s3 = sld [smem:[#allocation0]]
  $region26: #{tpu_custom_call.1} parent=0
    _
  %s5 = ssub.s32 1, %s3
  %s6 = scalar_select 0, %s5, %s3
  $region1: #{tpu_custom_call.1} parent=0
    #allocation2 [shape = 'u8[2048]{0}', space=vmem, size = 0x800, scoped, tag = 'input window, operand 0, single buffered']
    #allocation3 [shape = 's32[1]{0}', space=sflag, size = 0x4, scoped, tag = 'scoped memory for tpu_custom_call.1']
    #allocation4 [shape = 's32[1]{0}', space=sflag, size = 0x4, scoped, tag = 'scoped memory for tpu_custom_call.1']
    #allocation5 [shape = 'u8[1024]{0}', space=vmem, size = 0x400, scoped, tag = 'input window, operand 1, single buffered']
    #allocation6 [shape = 's32[1]{0}', space=sflag, size = 0x4, scoped, tag = 'scoped memory for tpu_custom_call.1']
    #allocation7 [shape = 'u8[2048]{0}', space=vmem, size = 0x800, scoped, tag = 'output window, operand 0, single buffered']
    %7 = vsyncpa [#allocation3], 0
    %8 = vsyncpa [#allocation6], 0
    %9 = vsyncpa [#allocation4], 0
    // Predicated region
    $region2: #{tpu_custom_call.1} parent=1 // pred_check
      _
    $region3: #{tpu_custom_call.1} parent=1 // pred_check_branch
      %11 = sbr.rel (0) target = $region5
    $region4: #{tpu_custom_call.1} parent=1 // pred_region
      %s13 = ssub.s32 64, 64
      %14 = vsyncadd [#allocation3], %s13
      %s16 = sshll.u32 [#allocation2], 4
      %s17 = int_to_ptr.vmem [resolvable:$true] %s16
      %19 = dma.hbm_to_vmem [thread:$0]  %s0, 64, %s17, [#allocation3]
    $region5: #{tpu_custom_call.1} parent=1 // pred_fallthru
      _
    // Predicated region
    $region6: #{tpu_custom_call.1} parent=1 // pred_check
      _
    $region7: #{tpu_custom_call.1} parent=1 // pred_check_branch
      %21 = sbr.rel (0) target = $region9
    $region8: #{tpu_custom_call.1} parent=1 // pred_region
      %s23 = ssub.s32 32, 32
      %24 = vsyncadd [#allocation6], %s23
      %s26 = sshll.u32 [#allocation5], 4
      %s27 = int_to_ptr.vmem [resolvable:$true] %s26
      %29 = dma.hbm_to_vmem [thread:$0]  %s1, 32, %s27, [#allocation6]
    $region9: #{tpu_custom_call.1} parent=1 // pred_fallthru
      _
    // Predicated region
    $region10: #{tpu_custom_call.1} parent=1 // pred_check
      _
    $region11: #{tpu_custom_call.1} parent=1 // pred_check_branch
      %31 = sbr.rel (0) target = $region13
    $region12: #{tpu_custom_call.1} parent=1 // pred_region
      %32 = dma.done [#allocation3], 64
    $region13: #{tpu_custom_call.1} parent=1 // pred_fallthru
      _
    // Predicated region
    $region14: #{tpu_custom_call.1} parent=1 // pred_check
      _
    $region15: #{tpu_custom_call.1} parent=1 // pred_check_branch
      %34 = sbr.rel (0) target = $region17
    $region16: #{tpu_custom_call.1} parent=1 // pred_region
      %35 = dma.done [#allocation6], 32
    $region17: #{tpu_custom_call.1} parent=1 // pred_fallthru
      _
    %v36 = vld [vmem:[#allocation2] sm:$0xf]
    %v37 = vld [vmem:[#allocation5] sm:$0x3]
    %v38 = vmul.f32 %v36, 5.656854
    %v40 = vlaneseq
    %v41 = vshrl.u32 %v40, 7
    %v42 = vsub.s32 0, %v41
    %v43 = vrot.slane %v37, %v42
    %v44 = vlaneseq
    %v45 = vshrl.u32 %v44, 7
    %v46 = vsub.s32 1, %v45
    %v47 = vrot.slane %v37, %v46
    %v48 = vcombine.low %v43, %v47
    %v50 = vunpack.c.l.s4 1983009808
    %v51 = vunpack.c.0.s8 %v50
    %v52 = vlaneseq
    %v53 = vshrl.u32 %v52, 7
    %v54 = vsub.s32 %v51, %v53
    %v55 = vrot.slane %v48, %v54
    %v57 = vadd.f32 %v38, %v55
    %58 = vst [vmem:[#allocation7] sm:$0xf] %v57
    // Predicated region
    $region18: #{tpu_custom_call.1} parent=1 // pred_check
      _
    $region19: #{tpu_custom_call.1} parent=1 // pred_check_branch
      %60 = sbr.rel (0) target = $region21
    $region20: #{tpu_custom_call.1} parent=1 // pred_region
      %s62 = ssub.s32 64, 64
      %63 = vsyncadd [#allocation4], %s62
      %s65 = sshll.u32 [#allocation7], 4
      %s66 = int_to_ptr.vmem [resolvable:$true] %s65
      %68 = dma.vmem_to_hbm [thread:$0]  %s66, 64, %s2, [#allocation4]
    $region21: #{tpu_custom_call.1} parent=1 // pred_fallthru
      _
    // Predicated region
    $region22: #{tpu_custom_call.1} parent=1 // pred_check
      _
    $region23: #{tpu_custom_call.1} parent=1 // pred_check_branch
      %70 = sbr.rel (0) target = $region25
    $region24: #{tpu_custom_call.1} parent=1 // pred_region
      %71 = dma.done [#allocation4], 64
    $region25: #{tpu_custom_call.1} parent=1 // pred_fallthru
      _
    %72 = vsyncpa [#allocation3], 1
    %73 = vsyncpa [#allocation6], 1
    %74 = vsyncpa [#allocation4], 1

</llo_original>
